<compile_context>
chip_gen: v6e
topology: v6e:2x2x1
jax: 0.10.0
libtpu: 0.0.40
codegen_flags: <defaults>
</compile_context>

<pallas_src>
import math

import jax
import jax.numpy as jnp
from jax import lax
from jax.experimental import pallas as pl
from jax.experimental.pallas import tpu as pltpu


# ---------------------------------------------------------------------------
# Fused kernel: in-kernel gather + all three GRU gates
#   z_topk = (Z[topk] * tanh(scores[topk]))^T                   (rows, cols)
#   update = sigmoid(Wu @ z_topk + Uu @ prev_W + bu)
#   reset  = sigmoid(Wr @ z_topk + Ur @ prev_W + br)
#   h_cap  = tanh  (Wh @ z_topk + Uh @ (reset*prev_W) + bh)
#   new_W  = (1 - update) * prev_W + update * h_cap
# ---------------------------------------------------------------------------
def _gru_cell_kernel(z_ref, idx_ref, s_ref, w_ref,
                     wall_ref, uall_ref, ball_ref, out_ref):
    rows, cols = w_ref.shape
    n_nodes = z_ref.shape[0]
    k = idx_ref.shape[0]                     # == cols

    # In-kernel top-k row gather fused with the tanh(score) scaling:
    # sel[c, n] = (n == idx[c]) * tanh(score_norm[c])  ->  z_topk^T = sel @ prev_Z
    iota = lax.broadcasted_iota(jnp.int32, (k, n_nodes), 1)
    scale = jnp.tanh(s_ref[...])                                        # (k, 1)
    sel = jnp.where(iota == idx_ref[...], scale, jnp.float32(0.0))      # (k, N)
    z_g = jnp.dot(sel, z_ref[...], preferred_element_type=jnp.float32)  # (k, rows)

    prev_W = w_ref[...]                       # (rows, cols)
    w_all = wall_ref[...]                     # (3*rows, rows)  [Wu; Wr; Wh]
    u_all = uall_ref[...]                     # (3*rows, rows)  [Uu; Ur; Uh]
    b_all = ball_ref[...]                     # (3*rows, cols)  [bu; br; bh]

    # W-side of all three gates in ONE MXU op: contract the feature axis of both
    # operands -> result[g*rows + r, c] = sum_f W[g*rows + r, f] * z_g[c, f]
    # (== W @ z_topk with z_topk = z_g^T, done once instead of per gate).
    dn = (((1,), (1,)), ((), ()))
    wx = lax.dot_general(w_all, z_g, dn,
                         preferred_element_type=jnp.float32)            # (3*rows, cols)

    # U-side of update + reset (both consume prev_W) in one MXU op.
    ux_ur = jnp.dot(u_all[: 2 * rows], prev_W,
                    preferred_element_type=jnp.float32)                 # (2*rows, cols)

    pre_ur = wx[: 2 * rows] + ux_ur + b_all[: 2 * rows]
    update = jax.nn.sigmoid(pre_ur[:rows])
    reset = jax.nn.sigmoid(pre_ur[rows:])

    ux_h = jnp.dot(u_all[2 * rows:], reset * prev_W,
                   preferred_element_type=jnp.float32)
    h_cap = jnp.tanh(wx[2 * rows:] + ux_h + b_all[2 * rows:])

    out_ref[...] = (1.0 - update) * prev_W + update * h_cap


def _fused_gru_cell(prev_Z, idx_col, s_col, prev_W, W_all, U_all, b_all):
    rows, cols = prev_W.shape
    n_nodes, feats = prev_Z.shape
    vmem = pl.BlockSpec(memory_space=pltpu.MemorySpace.VMEM)

    flops = (2 * cols * n_nodes * feats            # one-hot gather matmul
             + 2 * (3 * rows) * rows * cols        # packed W-side matmul
             + 2 * (2 * rows) * rows * cols        # packed U-side (update, reset)
             + 2 * rows * rows * cols              # U-side (htilda)
             + 8 * rows * cols)                    # elementwise blend
    transcendentals = 3 * rows * cols + cols
    bytes_accessed = 4 * (prev_Z.size + idx_col.size + s_col.size + prev_W.size
                          + W_all.size + U_all.size + b_all.size + rows * cols)

    return pl.pallas_call(
        _gru_cell_kernel,
        out_shape=jax.ShapeDtypeStruct((rows, cols), jnp.float32),
        in_specs=[vmem] * 7,
        out_specs=vmem,
        input_output_aliases={3: 0},               # new_W reuses prev_W's buffer
        cost_estimate=pl.CostEstimate(
            flops=int(flops),
            transcendentals=int(transcendentals),
            bytes_accessed=int(bytes_accessed)),
    )(prev_Z, idx_col, s_col, prev_W, W_all, U_all, b_all)


# ---------------------------------------------------------------------------
# Wrapper: scoring + top-k selection (XLA glue) + fused Pallas GRU kernel
# ---------------------------------------------------------------------------
def mat_gru_cell(prev_W, prev_Z, params):
    rows, cols = prev_W.shape                  # rows = in_channels, cols = out_channels = k
    scorer = params["scorer"]                  # (feats, 1)

    # Node scoring stays in plain XLA (a tiny matvec that fuses into top_k's producer).
    # The /||scorer|| normalisation is positive & monotone -> deferred past top_k.
    flat = jnp.matmul(prev_Z, scorer).reshape(-1)                   # (N,)
    vals, idx = lax.top_k(flat, cols)                               # data-dependent selection

    # pad_with_last_val semantics: -inf-scored picks are replaced by the last valid one.
    valid = vals > -jnp.inf
    last_valid_pos = jnp.maximum(jnp.sum(valid.astype(jnp.int32)) - 1, 0)
    idx = jnp.where(valid, idx, idx[last_valid_pos]).astype(jnp.int32)
    vals = jnp.where(valid, vals, vals[last_valid_pos])

    inv_nrm = lax.rsqrt(jnp.sum(scorer * scorer))                   # 1 / ||scorer||
    s_col = (vals * inv_nrm)[:, None].astype(jnp.float32)           # (k, 1) normalised scores
    idx_col = idx[:, None]                                          # (k, 1) int32

    # Pack the three gates' parameters so the kernel sees 7 operands instead of 12.
    W_all = jnp.concatenate([params["Wu"], params["Wr"], params["Wh"]], axis=0)
    U_all = jnp.concatenate([params["Uu"], params["Ur"], params["Uh"]], axis=0)
    b_all = jnp.concatenate([params["bu"], params["br"], params["bh"]], axis=0)

    return _fused_gru_cell(prev_Z, idx_col, s_col, prev_W, W_all, U_all, b_all)


# ---------------------------------------------------------------------------
# Deterministic parameter init (mirrors the PyTorch __init__ shapes/ranges)
# ---------------------------------------------------------------------------
def init_params(key, rows, cols):
    ks = jax.random.split(key, 7)
    stdv_w = 1.0 / math.sqrt(rows)       # W,U: (rows, rows), stdv = 1/sqrt(size(1))
    stdv_s = 1.0 / math.sqrt(rows)       # scorer: (feats, 1),  stdv = 1/sqrt(feats)

    def u(k, shape, s):
        return jax.random.uniform(k, shape, jnp.float32, minval=-s, maxval=s)

    return {
        "Wu": u(ks[0], (rows, rows), stdv_w), "Uu": u(ks[1], (rows, rows), stdv_w),
        "bu": jnp.zeros((rows, cols), jnp.float32),
        "Wr": u(ks[2], (rows, rows), stdv_w), "Ur": u(ks[3], (rows, rows), stdv_w),
        "br": jnp.zeros((rows, cols), jnp.float32),
        "Wh": u(ks[4], (rows, rows), stdv_w), "Uh": u(ks[5], (rows, rows), stdv_w),
        "bh": jnp.zeros((rows, cols), jnp.float32),
        "scorer": u(ks[6], (rows, 1), stdv_s),
    }


if __name__ == "__main__":
    in_channels = 32     # rows / feats
    out_channels = 16    # cols / k
    num_nodes = 64

    key = jax.random.PRNGKey(0)
    k_params, k_w, k_z = jax.random.split(key, 3)

    params = init_params(k_params, in_channels, out_channels)
    prev_W = jax.random.normal(k_w, (in_channels, out_channels), jnp.float32)
    prev_Z = jax.random.normal(k_z, (num_nodes, in_channels), jnp.float32)

    new_W = jax.jit(mat_gru_cell)(prev_W, prev_Z, params)
    jax.block_until_ready(new_W)

    assert new_W.shape == (in_channels, out_channels)
    assert jnp.all(jnp.isfinite(new_W))
    print("KERNEL_OK")
</pallas_src>

<mosaic_0001>
module attributes {stable_mosaic.version = 11 : i64} {
  func.func @_gru_cell_kernel(%arg0: memref<64x32xf32, #tpu.memory_space<vmem>>, %arg1: memref<16x1xi32, #tpu.memory_space<vmem>>, %arg2: memref<16x1xf32, #tpu.memory_space<vmem>>, %arg3: memref<32x16xf32, #tpu.memory_space<vmem>>, %arg4: memref<96x32xf32, #tpu.memory_space<vmem>>, %arg5: memref<96x32xf32, #tpu.memory_space<vmem>>, %arg6: memref<96x16xf32, #tpu.memory_space<vmem>>, %arg7: memref<32x16xf32, #tpu.memory_space<vmem>>) attributes {dimension_semantics = [], scalar_prefetch = 0 : i64, scratch_operands = 0 : i64, tpu.core_type = #tpu.core_type<tc>} {
    %0 = tpu.iota {dimensions = array<i32: 1>} : vector<16x64xi32>
    %c0 = arith.constant 0 : index
    %c0_0 = arith.constant 0 : index
    %1 = vector.load %arg2[%c0, %c0_0] : memref<16x1xf32, #tpu.memory_space<vmem>>, vector<16x1xf32>
    %2 = math.tanh %1 : vector<16x1xf32>
    %c0_1 = arith.constant 0 : index
    %c0_2 = arith.constant 0 : index
    %3 = vector.load %arg1[%c0_1, %c0_2] : memref<16x1xi32, #tpu.memory_space<vmem>>, vector<16x1xi32>
    %4 = vector.broadcast %3 : vector<16x1xi32> to vector<16x64xi32>
    %5 = arith.cmpi eq, %0, %4 : vector<16x64xi32>
    %cst = arith.constant 0.000000e+00 : f32
    %6 = vector.shape_cast %2 : vector<16x1xf32> to vector<16x1xf32>
    %7 = vector.broadcast %6 : vector<16x1xf32> to vector<16x64xf32>
    %8 = vector.broadcast %cst : f32 to vector<16x64xf32>
    %9 = arith.select %5, %7, %8 : vector<16x64xi1>, vector<16x64xf32>
    %c0_3 = arith.constant 0 : index
    %c0_4 = arith.constant 0 : index
    %10 = vector.load %arg0[%c0_3, %c0_4] : memref<64x32xf32, #tpu.memory_space<vmem>>, vector<64x32xf32>
    %cst_5 = arith.constant dense<0.000000e+00> : vector<16x32xf32>
    %11 = tpu.matmul %9, %10, %cst_5 {dimension_numbers = #tpu.dot_dimension_numbers<[1], [0], [0], [1], [0, 0, 1, 1], [], []>} : vector<16x64xf32>, vector<64x32xf32>, vector<16x32xf32> -> vector<16x32xf32>
    %c0_6 = arith.constant 0 : index
    %c0_7 = arith.constant 0 : index
    %12 = vector.load %arg3[%c0_6, %c0_7] : memref<32x16xf32, #tpu.memory_space<vmem>>, vector<32x16xf32>
    %c0_8 = arith.constant 0 : index
    %c0_9 = arith.constant 0 : index
    %13 = vector.load %arg4[%c0_8, %c0_9] : memref<96x32xf32, #tpu.memory_space<vmem>>, vector<96x32xf32>
    %c0_10 = arith.constant 0 : index
    %c0_11 = arith.constant 0 : index
    %14 = vector.load %arg5[%c0_10, %c0_11] : memref<96x32xf32, #tpu.memory_space<vmem>>, vector<96x32xf32>
    %c0_12 = arith.constant 0 : index
    %c0_13 = arith.constant 0 : index
    %15 = vector.load %arg6[%c0_12, %c0_13] : memref<96x16xf32, #tpu.memory_space<vmem>>, vector<96x16xf32>
    %cst_14 = arith.constant dense<0.000000e+00> : vector<96x16xf32>
    %16 = tpu.matmul %13, %11, %cst_14 {dimension_numbers = #tpu.dot_dimension_numbers<[1], [1], [0], [0], [0, 0, 1, 0], [], []>} : vector<96x32xf32>, vector<16x32xf32>, vector<96x16xf32> -> vector<96x16xf32>
    %17 = vector.extract_strided_slice %14 {offsets = [0, 0], sizes = [64, 32], strides = [1, 1]} : vector<96x32xf32> to vector<64x32xf32>
    %cst_15 = arith.constant dense<0.000000e+00> : vector<64x16xf32>
    %18 = tpu.matmul %17, %12, %cst_15 {dimension_numbers = #tpu.dot_dimension_numbers<[1], [0], [0], [1], [0, 0, 1, 1], [], []>} : vector<64x32xf32>, vector<32x16xf32>, vector<64x16xf32> -> vector<64x16xf32>
    %19 = vector.extract_strided_slice %16 {offsets = [0, 0], sizes = [64, 16], strides = [1, 1]} : vector<96x16xf32> to vector<64x16xf32>
    %20 = arith.addf %19, %18 : vector<64x16xf32>
    %21 = vector.extract_strided_slice %15 {offsets = [0, 0], sizes = [64, 16], strides = [1, 1]} : vector<96x16xf32> to vector<64x16xf32>
    %22 = arith.addf %20, %21 : vector<64x16xf32>
    %23 = vector.extract_strided_slice %22 {offsets = [0, 0], sizes = [32, 16], strides = [1, 1]} : vector<64x16xf32> to vector<32x16xf32>
    %24 = arith.negf %23 : vector<32x16xf32>
    %25 = math.exp %24 : vector<32x16xf32>
    %cst_16 = arith.constant 1.000000e+00 : f32
    %26 = vector.broadcast %cst_16 : f32 to vector<32x16xf32>
    %27 = arith.addf %26, %25 : vector<32x16xf32>
    %28 = arith.divf %26, %27 : vector<32x16xf32>
    %29 = vector.extract_strided_slice %22 {offsets = [32, 0], sizes = [32, 16], strides = [1, 1]} : vector<64x16xf32> to vector<32x16xf32>
    %30 = arith.negf %29 : vector<32x16xf32>
    %31 = math.exp %30 : vector<32x16xf32>
    %cst_17 = arith.constant 1.000000e+00 : f32
    %32 = vector.broadcast %cst_17 : f32 to vector<32x16xf32>
    %33 = arith.addf %32, %31 : vector<32x16xf32>
    %34 = arith.divf %32, %33 : vector<32x16xf32>
    %35 = vector.extract_strided_slice %14 {offsets = [64, 0], sizes = [32, 32], strides = [1, 1]} : vector<96x32xf32> to vector<32x32xf32>
    %36 = arith.mulf %34, %12 : vector<32x16xf32>
    %cst_18 = arith.constant dense<0.000000e+00> : vector<32x16xf32>
    %37 = tpu.matmul %35, %36, %cst_18 {dimension_numbers = #tpu.dot_dimension_numbers<[1], [0], [0], [1], [0, 0, 1, 1], [], []>} : vector<32x32xf32>, vector<32x16xf32>, vector<32x16xf32> -> vector<32x16xf32>
    %38 = vector.extract_strided_slice %16 {offsets = [64, 0], sizes = [32, 16], strides = [1, 1]} : vector<96x16xf32> to vector<32x16xf32>
    %39 = arith.addf %38, %37 : vector<32x16xf32>
    %40 = vector.extract_strided_slice %15 {offsets = [64, 0], sizes = [32, 16], strides = [1, 1]} : vector<96x16xf32> to vector<32x16xf32>
    %41 = arith.addf %39, %40 : vector<32x16xf32>
    %42 = math.tanh %41 : vector<32x16xf32>
    %cst_19 = arith.constant 1.000000e+00 : f32
    %43 = vector.broadcast %cst_19 : f32 to vector<32x16xf32>
    %44 = arith.subf %43, %28 : vector<32x16xf32>
    %45 = arith.mulf %44, %12 : vector<32x16xf32>
    %46 = arith.mulf %28, %42 : vector<32x16xf32>
    %47 = arith.addf %45, %46 : vector<32x16xf32>
    %c0_20 = arith.constant 0 : index
    %c0_21 = arith.constant 0 : index
    %48 = vector.load %arg7[%c0_20, %c0_21] : memref<32x16xf32, #tpu.memory_space<vmem>>, vector<32x16xf32>
    tpu.vector_store %arg7[%c0_20, %c0_21], %47 {strides = array<i32>} : memref<32x16xf32, #tpu.memory_space<vmem>>, vector<32x16xf32>,
    return
  }
}

</mosaic_0001>

<llo_original>
// kernel: mat_gru_cell.1
$region0: #{mat_gru_cell.1}
  #allocation0 [shape = 'u32[]', space=smem, size = 0x4, offset = 0x4, fixed_abs, tag = 'smem constant byte address 0x4 - core index']
  #allocation1 [shape = 'u32[144,128]{1,0:T(1,128)}', space=vmem, size = 0x12000, scoped, tag = 'internal scratch']
  %s0 = inlined_call_operand.vmem [shape: f32[64,32], index: 0, kind: input, shape index: {}]
  %s1 = inlined_call_operand.vmem [shape: s32[16,1], index: 1, kind: input, shape index: {}]
  %s2 = inlined_call_operand.vmem [shape: f32[16,1], index: 2, kind: input, shape index: {}]
  %s3 = inlined_call_operand.vmem [shape: f32[32,16], index: 3, kind: input, shape index: {}, may-alias: {3,7}]
  %s4 = inlined_call_operand.vmem [shape: f32[96,32], index: 4, kind: input, shape index: {}]
  %s5 = inlined_call_operand.vmem [shape: f32[96,32], index: 5, kind: input, shape index: {}]
  %s6 = inlined_call_operand.vmem [shape: f32[96,16], index: 6, kind: input, shape index: {}]
  %s7 = inlined_call_operand.vmem [shape: f32[32,16], index: 7, kind: output, shape index: {}, may-alias: {3,7}]
  %s8 = sld [smem:[#allocation0]]
  $region38: #{mat_gru_cell.1} parent=0
    _
  %s10 = ssub.s32 1, %s8
  %s11 = scalar_select 0, %s10, %s8
  // Predicated region
  $region2: #{mat_gru_cell.1} parent=0 // pred_check
    _
  $region3: #{mat_gru_cell.1} parent=0 // pred_check_branch
    %13 = sbr.rel (0) target = $region5
  $region4: #{mat_gru_cell.1} parent=0 // pred_region
    _
  $region5: #{mat_gru_cell.1} parent=0 // pred_fallthru
    _
  // Predicated region
  $region6: #{mat_gru_cell.1} parent=0 // pred_check
    _
  $region7: #{mat_gru_cell.1} parent=0 // pred_check_branch
    %15 = sbr.rel (0) target = $region9
  $region8: #{mat_gru_cell.1} parent=0 // pred_region
    _
  $region9: #{mat_gru_cell.1} parent=0 // pred_fallthru
    _
  // Predicated region
  $region10: #{mat_gru_cell.1} parent=0 // pred_check
    _
  $region11: #{mat_gru_cell.1} parent=0 // pred_check_branch
    %17 = sbr.rel (0) target = $region13
  $region12: #{mat_gru_cell.1} parent=0 // pred_region
    _
  $region13: #{mat_gru_cell.1} parent=0 // pred_fallthru
    _
  // Predicated region
  $region14: #{mat_gru_cell.1} parent=0 // pred_check
    _
  $region15: #{mat_gru_cell.1} parent=0 // pred_check_branch
    %19 = sbr.rel (0) target = $region17
  $region16: #{mat_gru_cell.1} parent=0 // pred_region
    _
  $region17: #{mat_gru_cell.1} parent=0 // pred_fallthru
    _
  // Predicated region
  $region18: #{mat_gru_cell.1} parent=0 // pred_check
    _
  $region19: #{mat_gru_cell.1} parent=0 // pred_check_branch
    %21 = sbr.rel (0) target = $region21
  $region20: #{mat_gru_cell.1} parent=0 // pred_region
    _
  $region21: #{mat_gru_cell.1} parent=0 // pred_fallthru
    _
  // Predicated region
  $region22: #{mat_gru_cell.1} parent=0 // pred_check
    _
  $region23: #{mat_gru_cell.1} parent=0 // pred_check_branch
    %23 = sbr.rel (0) target = $region25
  $region24: #{mat_gru_cell.1} parent=0 // pred_region
    _
  $region25: #{mat_gru_cell.1} parent=0 // pred_fallthru
    _
  // Predicated region
  $region26: #{mat_gru_cell.1} parent=0 // pred_check
    _
  $region27: #{mat_gru_cell.1} parent=0 // pred_check_branch
    %25 = sbr.rel (0) target = $region29
  $region28: #{mat_gru_cell.1} parent=0 // pred_region
    _
  $region29: #{mat_gru_cell.1} parent=0 // pred_fallthru
    _
  %v26 = vlaneseq
  %v27 = vand.u32 %v26, 127
  %v28 = vld [vmem:[%s2] sm:$0xff]
  %v29 = vld [vmem:[%s2 + $0x8] sm:$0xff]
  %v30 = vtanh.pop %v28
  %v31 = vtanh.pop %v29
  %v32 = vld [vmem:[%s1] sm:$0xff]
  %v33 = vld [vmem:[%s1 + $0x8] sm:$0xff]
  %34 = vset.pattern.permute.xlu0 0
  %35 = vperm.xlu0 %34, %v32
  %v36 = vpop.permute.xlu0 %35
  %37 = vset.pattern.permute.xlu0 0
  %38 = vperm.xlu0 %37, %v33
  %v39 = vpop.permute.xlu0 %38
  %vm40 = vcmp.eq.s32.totalorder %v27, %v36
  %vm41 = vcmp.eq.s32.totalorder %v27, %v39
  %43 = vset.pattern.permute.xlu0 0
  %44 = vperm.xlu0 %43, %v30
  %v45 = vpop.permute.xlu0 %44
  %48 = vset.pattern.permute.xlu0 0
  %49 = vperm.xlu0 %48, %v31
  %v50 = vpop.permute.xlu0 %49
  %v52 = vsel %vm40, %v45, 0.0
  %v53 = vsel %vm41, %v50, 0.0
  %v54 = vld [vmem:[%s0] sm:$0xff]
  %v55 = vld [vmem:[%s0 + $0x8] sm:$0xff]
  %v56 = vld [vmem:[%s0 + $0x10] sm:$0xff]
  %v57 = vld [vmem:[%s0 + $0x18] sm:$0xff]
  %v58 = vld [vmem:[%s0 + $0x20] sm:$0xff]
  %v59 = vld [vmem:[%s0 + $0x28] sm:$0xff]
  %v60 = vld [vmem:[%s0 + $0x30] sm:$0xff]
  %v61 = vld [vmem:[%s0 + $0x38] sm:$0xff]
  %vm62 = vcmask 523264
  %v64 = vsel %vm62, %v52, 0
  %v67 = vsel %vm62, %v53, 0
  %69 = vmatprep.subr.mxu0 0.0
  %70 = vmatpush1.msra.mxu0 0.0
  %71 = vmatprep.subr.mxu0 0.0
  %72 = vmatpush1.msra.mxu0 0.0
  %73 = vmatprep.subr.mxu0 0.0
  %74 = vmatpush1.msra.mxu0 0.0
  %75 = vmatprep.subr.mxu0 0.0
  %76 = vmatpush1.msra.mxu0 0.0
  %77 = vmatprep.subr.mxu0 0.0
  %78 = vmatpush1.msra.mxu0 0.0
  %79 = vmatprep.subr.mxu0 0.0
  %80 = vmatpush1.msra.mxu0 0.0
  %81 = vmatprep.subr.mxu0 0.0
  %82 = vmatpush1.msra.mxu0 0.0
  %83 = vmatprep.subr.mxu0 0.0
  %84 = vmatpush1.msra.mxu0 0.0
  %85 = vmatprep.subr.mxu0 0.0
  %86 = vmatpush1.msra.mxu0 %v61
  %87 = vmatprep.subr.mxu0 0.0
  %88 = vmatpush1.msra.mxu0 %v60
  %89 = vmatprep.subr.mxu0 0.0
  %90 = vmatpush1.msra.mxu0 %v59
  %91 = vmatprep.subr.mxu0 0.0
  %92 = vmatpush1.msra.mxu0 %v58
  %93 = vmatprep.subr.mxu0 0.0
  %94 = vmatpush1.msra.mxu0 %v57
  %95 = vmatprep.subr.mxu0 0.0
  %96 = vmatpush1.msra.mxu0 %v56
  %97 = vmatprep.subr.mxu0 0.0
  %98 = vmatpush1.msra.mxu0 %v55
  %99 = vmatprep.subr.mxu0 0.0
  %100 = vmatpush1.msra.mxu0 %v54
  %101 = vmatprep.subr.mxu0 0.0
  %102 = vmatpush2.msra.mxu0 0.0
  %103 = vmatprep.subr.mxu0 0.0
  %104 = vmatpush2.msra.mxu0 0.0
  %105 = vmatprep.subr.mxu0 0.0
  %106 = vmatpush2.msra.mxu0 0.0
  %107 = vmatprep.subr.mxu0 0.0
  %108 = vmatpush2.msra.mxu0 0.0
  %109 = vmatprep.subr.mxu0 0.0
  %110 = vmatpush2.msra.mxu0 0.0
  %111 = vmatprep.subr.mxu0 0.0
  %112 = vmatpush2.msra.mxu0 0.0
  %113 = vmatprep.subr.mxu0 0.0
  %114 = vmatpush2.msra.mxu0 0.0
  %115 = vmatprep.subr.mxu0 0.0
  %116 = vmatpush2.msra.mxu0 0.0
  %117 = vmatprep.subr.mxu0 0.0
  %118 = vmatpush2.msra.mxu0 0.0
  %119 = vmatprep.subr.mxu0 0.0
  %120 = vmatpush2.msra.mxu0 0.0
  %121 = vmatprep.subr.mxu0 0.0
  %122 = vmatpush2.msra.mxu0 0.0
  %123 = vmatprep.subr.mxu0 0.0
  %124 = vmatpush2.msra.mxu0 0.0
  %125 = vmatprep.subr.mxu0 0.0
  %126 = vmatpush2.msra.mxu0 0.0
  %127 = vmatprep.subr.mxu0 0.0
  %128 = vmatpush2.msra.mxu0 0.0
  %129 = vmatprep.subr.mxu0 0.0
  %130 = vmatpush2.msra.mxu0 0.0
  %131 = vmatprep.subr.mxu0 0.0
  %132 = vmatpush2.msra.mxu0 0.0
  %133 = vmatprep.mubr.f32.mxu0 0.0
  %134 = vmatmul.mubr.f32.gmra.mxu0 %v64
  %v135 = vpop.f32.mrf.mxu0
  %v136 = vadd.f32 0.0, %v135
  %v137 = vpop.f32.mrf.mxu0
  %138 = vmatprep.mubr.f32.mxu0 0.0
  %139 = vmatmul.mubr.f32.gmra.mxu0 %v67
  %v140 = vpop.f32.mrf.mxu0
  %v141 = vadd.f32 0.0, %v140
  %v142 = vpop.f32.mrf.mxu0
  %143 = vdwg.mxu0
  %v144 = vld [vmem:[%s3] sm:$0xff]
  %v145 = vld [vmem:[%s3 + $0x8] sm:$0xff]
  %v146 = vld [vmem:[%s3 + $0x10] sm:$0xff]
  %v147 = vld [vmem:[%s3 + $0x18] sm:$0xff]
  %v148 = vld [vmem:[%s4] sm:$0xff]
  %v149 = vld [vmem:[%s4 + $0x8] sm:$0xff]
  %v150 = vld [vmem:[%s4 + $0x10] sm:$0xff]
  %v151 = vld [vmem:[%s4 + $0x18] sm:$0xff]
  %v152 = vld [vmem:[%s4 + $0x20] sm:$0xff]
  %v153 = vld [vmem:[%s4 + $0x28] sm:$0xff]
  %v154 = vld [vmem:[%s4 + $0x30] sm:$0xff]
  %v155 = vld [vmem:[%s4 + $0x38] sm:$0xff]
  %v156 = vld [vmem:[%s4 + $0x40] sm:$0xff]
  %v157 = vld [vmem:[%s4 + $0x48] sm:$0xff]
  %v158 = vld [vmem:[%s4 + $0x50] sm:$0xff]
  %v159 = vld [vmem:[%s4 + $0x58] sm:$0xff]
  %v160 = vld [vmem:[%s5] sm:$0xff]
  %v161 = vld [vmem:[%s5 + $0x8] sm:$0xff]
  %v162 = vld [vmem:[%s5 + $0x10] sm:$0xff]
  %v163 = vld [vmem:[%s5 + $0x18] sm:$0xff]
  %v164 = vld [vmem:[%s5 + $0x20] sm:$0xff]
  %v165 = vld [vmem:[%s5 + $0x28] sm:$0xff]
  %v166 = vld [vmem:[%s5 + $0x30] sm:$0xff]
  %v167 = vld [vmem:[%s5 + $0x38] sm:$0xff]
  %v168 = vld [vmem:[%s5 + $0x40] sm:$0xff]
  %v169 = vld [vmem:[%s5 + $0x48] sm:$0xff]
  %v170 = vld [vmem:[%s5 + $0x50] sm:$0xff]
  %v171 = vld [vmem:[%s5 + $0x58] sm:$0xff]
  %v172 = vld [vmem:[%s6] sm:$0xff]
  %v173 = vld [vmem:[%s6 + $0x8] sm:$0xff]
  %v174 = vld [vmem:[%s6 + $0x10] sm:$0xff]
  %v175 = vld [vmem:[%s6 + $0x18] sm:$0xff]
  %v176 = vld [vmem:[%s6 + $0x20] sm:$0xff]
  %v177 = vld [vmem:[%s6 + $0x28] sm:$0xff]
  %v178 = vld [vmem:[%s6 + $0x30] sm:$0xff]
  %v179 = vld [vmem:[%s6 + $0x38] sm:$0xff]
  %v180 = vld [vmem:[%s6 + $0x40] sm:$0xff]
  %v181 = vld [vmem:[%s6 + $0x48] sm:$0xff]
  %v182 = vld [vmem:[%s6 + $0x50] sm:$0xff]
  %v183 = vld [vmem:[%s6 + $0x58] sm:$0xff]
  %vm184 = vcmask 261120
  %v186 = vsel %vm184, %v148, 0
  %v189 = vsel %vm184, %v149, 0
  %v192 = vsel %vm184, %v150, 0
  %v195 = vsel %vm184, %v151, 0
  %v198 = vsel %vm184, %v152, 0
  %v201 = vsel %vm184, %v153, 0
  %v204 = vsel %vm184, %v154, 0
  %v207 = vsel %vm184, %v155, 0
  %v210 = vsel %vm184, %v156, 0
  %v213 = vsel %vm184, %v157, 0
  %v216 = vsel %vm184, %v158, 0
  %v219 = vsel %vm184, %v159, 0
  %v222 = vsel %vm184, %v136, 0
  %v225 = vsel %vm184, %v141, 0
  %227 = vmatprep.subr.mxu0 0.0
  %228 = vmatpush1.xpose.msra.mxu0 0.0
  %229 = vmatprep.subr.mxu0 0.0
  %230 = vmatpush1.xpose.msra.mxu0 0.0
  %231 = vmatprep.subr.mxu0 0.0
  %232 = vmatpush1.xpose.msra.mxu0 0.0
  %233 = vmatprep.subr.mxu0 0.0
  %234 = vmatpush1.xpose.msra.mxu0 0.0
  %235 = vmatprep.subr.mxu0 0.0
  %236 = vmatpush1.xpose.msra.mxu0 0.0
  %237 = vmatprep.subr.mxu0 0.0
  %238 = vmatpush1.xpose.msra.mxu0 0.0
  %239 = vmatprep.subr.mxu0 0.0
  %240 = vmatpush1.xpose.msra.mxu0 0.0
  %241 = vmatprep.subr.mxu0 0.0
  %242 = vmatpush1.xpose.msra.mxu0 0.0
  %243 = vmatprep.subr.mxu0 0.0
  %244 = vmatpush1.xpose.msra.mxu0 0.0
  %245 = vmatprep.subr.mxu0 0.0
  %246 = vmatpush1.xpose.msra.mxu0 0.0
  %247 = vmatprep.subr.mxu0 0.0
  %248 = vmatpush1.xpose.msra.mxu0 0.0
  %249 = vmatprep.subr.mxu0 0.0
  %250 = vmatpush1.xpose.msra.mxu0 0.0
  %251 = vmatprep.subr.mxu0 0.0
  %252 = vmatpush1.xpose.msra.mxu0 0.0
  %253 = vmatprep.subr.mxu0 0.0
  %254 = vmatpush1.xpose.msra.mxu0 0.0
  %255 = vmatprep.subr.mxu0 0.0
  %256 = vmatpush1.xpose.msra.mxu0 %v225
  %257 = vmatprep.subr.mxu0 0.0
  %258 = vmatpush1.xpose.msra.mxu0 %v222
  %259 = vmatprep.subr.mxu0 0.0
  %260 = vmatpush2.xpose.msra.mxu0 0.0
  %261 = vmatprep.subr.mxu0 0.0
  %262 = vmatpush2.xpose.msra.mxu0 0.0
  %263 = vmatprep.subr.mxu0 0.0
  %264 = vmatpush2.xpose.msra.mxu0 0.0
  %265 = vmatprep.subr.mxu0 0.0
  %266 = vmatpush2.xpose.msra.mxu0 0.0
  %267 = vmatprep.subr.mxu0 0.0
  %268 = vmatpush2.xpose.msra.mxu0 0.0
  %269 = vmatprep.subr.mxu0 0.0
  %270 = vmatpush2.xpose.msra.mxu0 0.0
  %271 = vmatprep.subr.mxu0 0.0
  %272 = vmatpush2.xpose.msra.mxu0 0.0
  %273 = vmatprep.subr.mxu0 0.0
  %274 = vmatpush2.xpose.msra.mxu0 0.0
  %275 = vmatprep.subr.mxu0 0.0
  %276 = vmatpush2.xpose.msra.mxu0 0.0
  %277 = vmatprep.subr.mxu0 0.0
  %278 = vmatpush2.xpose.msra.mxu0 0.0
  %279 = vmatprep.subr.mxu0 0.0
  %280 = vmatpush2.xpose.msra.mxu0 0.0
  %281 = vmatprep.subr.mxu0 0.0
  %282 = vmatpush2.xpose.msra.mxu0 0.0
  %283 = vmatprep.subr.mxu0 0.0
  %284 = vmatpush2.xpose.msra.mxu0 0.0
  %285 = vmatprep.subr.mxu0 0.0
  %286 = vmatpush2.xpose.msra.mxu0 0.0
  %287 = vmatprep.subr.mxu0 0.0
  %288 = vmatpush2.xpose.msra.mxu0 0.0
  %289 = vmatprep.subr.mxu0 0.0
  %290 = vmatpush2.xpose.msra.mxu0 0.0
  %291 = vmatprep.mubr.f32.mxu0 0.0
  %292 = vmatmul.mubr.f32.gmra.mxu0 %v186
  %v293 = vpop.f32.mrf.mxu0
  %v294 = vadd.f32 0.0, %v293
  %v295 = vpop.f32.mrf.mxu0
  %296 = vmatprep.mubr.f32.mxu0 0.0
  %297 = vmatmul.mubr.f32.gmra.mxu0 %v189
  %v298 = vpop.f32.mrf.mxu0
  %v299 = vadd.f32 0.0, %v298
  %v300 = vpop.f32.mrf.mxu0
  %301 = vmatprep.mubr.f32.mxu0 0.0
  %302 = vmatmul.mubr.f32.gmra.mxu0 %v192
  %v303 = vpop.f32.mrf.mxu0
  %v304 = vadd.f32 0.0, %v303
  %v305 = vpop.f32.mrf.mxu0
  %306 = vmatprep.mubr.f32.mxu0 0.0
  %307 = vmatmul.mubr.f32.gmra.mxu0 %v195
  %v308 = vpop.f32.mrf.mxu0
  %v309 = vadd.f32 0.0, %v308
  %v310 = vpop.f32.mrf.mxu0
  %311 = vmatprep.mubr.f32.mxu0 0.0
  %312 = vmatmul.mubr.f32.gmra.mxu0 %v198
  %v313 = vpop.f32.mrf.mxu0
  %v314 = vadd.f32 0.0, %v313
  %v315 = vpop.f32.mrf.mxu0
  %316 = vmatprep.mubr.f32.mxu0 0.0
  %317 = vmatmul.mubr.f32.gmra.mxu0 %v201
  %v318 = vpop.f32.mrf.mxu0
  %v319 = vadd.f32 0.0, %v318
  %v320 = vpop.f32.mrf.mxu0
  %321 = vmatprep.mubr.f32.mxu0 0.0
  %322 = vmatmul.mubr.f32.gmra.mxu0 %v204
  %v323 = vpop.f32.mrf.mxu0
  %v324 = vadd.f32 0.0, %v323
  %v325 = vpop.f32.mrf.mxu0
  %326 = vmatprep.mubr.f32.mxu0 0.0
  %327 = vmatmul.mubr.f32.gmra.mxu0 %v207
  %v328 = vpop.f32.mrf.mxu0
  %v329 = vadd.f32 0.0, %v328
  %v330 = vpop.f32.mrf.mxu0
  %331 = vmatprep.mubr.f32.mxu0 0.0
  %332 = vmatmul.mubr.f32.gmra.mxu0 %v210
  %v333 = vpop.f32.mrf.mxu0
  %v334 = vadd.f32 0.0, %v333
  %v335 = vpop.f32.mrf.mxu0
  %336 = vmatprep.mubr.f32.mxu0 0.0
  %337 = vmatmul.mubr.f32.gmra.mxu0 %v213
  %v338 = vpop.f32.mrf.mxu0
  %v339 = vadd.f32 0.0, %v338
  %v340 = vpop.f32.mrf.mxu0
  %341 = vmatprep.mubr.f32.mxu0 0.0
  %342 = vmatmul.mubr.f32.gmra.mxu0 %v216
  %v343 = vpop.f32.mrf.mxu0
  %v344 = vadd.f32 0.0, %v343
  %v345 = vpop.f32.mrf.mxu0
  %346 = vmatprep.mubr.f32.mxu0 0.0
  %347 = vmatmul.mubr.f32.gmra.mxu0 %v219
  %v348 = vpop.f32.mrf.mxu0
  %v349 = vadd.f32 0.0, %v348
  %v350 = vpop.f32.mrf.mxu0
  %351 = vdwg.mxu0
  %v353 = vsel %vm184, %v160, 0
  %v356 = vsel %vm184, %v161, 0
  %v359 = vsel %vm184, %v162, 0
  %v362 = vsel %vm184, %v163, 0
  %v365 = vsel %vm184, %v164, 0
  %v368 = vsel %vm184, %v165, 0
  %v371 = vsel %vm184, %v166, 0
  %v374 = vsel %vm184, %v167, 0
  %376 = vmatprep.subr.mxu0 0.0
  %377 = vmatpush1.msra.mxu0 0.0
  %378 = vmatprep.subr.mxu0 0.0
  %379 = vmatpush1.msra.mxu0 0.0
  %380 = vmatprep.subr.mxu0 0.0
  %381 = vmatpush1.msra.mxu0 0.0
  %382 = vmatprep.subr.mxu0 0.0
  %383 = vmatpush1.msra.mxu0 0.0
  %384 = vmatprep.subr.mxu0 0.0
  %385 = vmatpush1.msra.mxu0 0.0
  %386 = vmatprep.subr.mxu0 0.0
  %387 = vmatpush1.msra.mxu0 0.0
  %388 = vmatprep.subr.mxu0 0.0
  %389 = vmatpush1.msra.mxu0 0.0
  %390 = vmatprep.subr.mxu0 0.0
  %391 = vmatpush1.msra.mxu0 0.0
  %392 = vmatprep.subr.mxu0 0.0
  %393 = vmatpush1.msra.mxu0 0.0
  %394 = vmatprep.subr.mxu0 0.0
  %395 = vmatpush1.msra.mxu0 0.0
  %396 = vmatprep.subr.mxu0 0.0
  %397 = vmatpush1.msra.mxu0 0.0
  %398 = vmatprep.subr.mxu0 0.0
  %399 = vmatpush1.msra.mxu0 0.0
  %400 = vmatprep.subr.mxu0 0.0
  %401 = vmatpush1.msra.mxu0 %v147
  %402 = vmatprep.subr.mxu0 0.0
  %403 = vmatpush1.msra.mxu0 %v146
  %404 = vmatprep.subr.mxu0 0.0
  %405 = vmatpush1.msra.mxu0 %v145
  %406 = vmatprep.subr.mxu0 0.0
  %407 = vmatpush1.msra.mxu0 %v144
  %408 = vmatprep.subr.mxu0 0.0
  %409 = vmatpush2.msra.mxu0 0.0
  %410 = vmatprep.subr.mxu0 0.0
  %411 = vmatpush2.msra.mxu0 0.0
  %412 = vmatprep.subr.mxu0 0.0
  %413 = vmatpush2.msra.mxu0 0.0
  %414 = vmatprep.subr.mxu0 0.0
  %415 = vmatpush2.msra.mxu0 0.0
  %416 = vmatprep.subr.mxu0 0.0
  %417 = vmatpush2.msra.mxu0 0.0
  %418 = vmatprep.subr.mxu0 0.0
  %419 = vmatpush2.msra.mxu0 0.0
  %420 = vmatprep.subr.mxu0 0.0
  %421 = vmatpush2.msra.mxu0 0.0
  %422 = vmatprep.subr.mxu0 0.0
  %423 = vmatpush2.msra.mxu0 0.0
  %424 = vmatprep.subr.mxu0 0.0
  %425 = vmatpush2.msra.mxu0 0.0
  %426 = vmatprep.subr.mxu0 0.0
  %427 = vmatpush2.msra.mxu0 0.0
  %428 = vmatprep.subr.mxu0 0.0
  %429 = vmatpush2.msra.mxu0 0.0
  %430 = vmatprep.subr.mxu0 0.0
  %431 = vmatpush2.msra.mxu0 0.0
  %432 = vmatprep.subr.mxu0 0.0
  %433 = vmatpush2.msra.mxu0 0.0
  %434 = vmatprep.subr.mxu0 0.0
  %435 = vmatpush2.msra.mxu0 0.0
  %436 = vmatprep.subr.mxu0 0.0
  %437 = vmatpush2.msra.mxu0 0.0
  %438 = vmatprep.subr.mxu0 0.0
  %439 = vmatpush2.msra.mxu0 0.0
  %440 = vmatprep.mubr.f32.mxu0 0.0
  %441 = vmatmul.mubr.f32.gmra.mxu0 %v353
  %v442 = vpop.f32.mrf.mxu0
  %v443 = vadd.f32 0.0, %v442
  %v444 = vpop.f32.mrf.mxu0
  %445 = vmatprep.mubr.f32.mxu0 0.0
  %446 = vmatmul.mubr.f32.gmra.mxu0 %v356
  %v447 = vpop.f32.mrf.mxu0
  %v448 = vadd.f32 0.0, %v447
  %v449 = vpop.f32.mrf.mxu0
  %450 = vmatprep.mubr.f32.mxu0 0.0
  %451 = vmatmul.mubr.f32.gmra.mxu0 %v359
  %v452 = vpop.f32.mrf.mxu0
  %v453 = vadd.f32 0.0, %v452
  %v454 = vpop.f32.mrf.mxu0
  %455 = vmatprep.mubr.f32.mxu0 0.0
  %456 = vmatmul.mubr.f32.gmra.mxu0 %v362
  %v457 = vpop.f32.mrf.mxu0
  %v458 = vadd.f32 0.0, %v457
  %v459 = vpop.f32.mrf.mxu0
  %460 = vmatprep.mubr.f32.mxu0 0.0
  %461 = vmatmul.mubr.f32.gmra.mxu0 %v365
  %v462 = vpop.f32.mrf.mxu0
  %v463 = vadd.f32 0.0, %v462
  %v464 = vpop.f32.mrf.mxu0
  %465 = vmatprep.mubr.f32.mxu0 0.0
  %466 = vmatmul.mubr.f32.gmra.mxu0 %v368
  %v467 = vpop.f32.mrf.mxu0
  %v468 = vadd.f32 0.0, %v467
  %v469 = vpop.f32.mrf.mxu0
  %470 = vmatprep.mubr.f32.mxu0 0.0
  %471 = vmatmul.mubr.f32.gmra.mxu0 %v371
  %v472 = vpop.f32.mrf.mxu0
  %v473 = vadd.f32 0.0, %v472
  %v474 = vpop.f32.mrf.mxu0
  %475 = vmatprep.mubr.f32.mxu0 0.0
  %476 = vmatmul.mubr.f32.gmra.mxu0 %v374
  %v477 = vpop.f32.mrf.mxu0
  %v478 = vadd.f32 0.0, %v477
  %v479 = vpop.f32.mrf.mxu0
  %480 = vdwg.mxu0
  %v481 = vadd.f32 %v294, %v443
  %v482 = vadd.f32 %v299, %v448
  %v483 = vadd.f32 %v304, %v453
  %v484 = vadd.f32 %v309, %v458
  %v485 = vadd.f32 %v314, %v463
  %v486 = vadd.f32 %v319, %v468
  %v487 = vadd.f32 %v324, %v473
  %v488 = vadd.f32 %v329, %v478
  %v489 = vadd.f32 %v481, %v172
  %v490 = vadd.f32 %v482, %v173
  %v491 = vadd.f32 %v483, %v174
  %v492 = vadd.f32 %v484, %v175
  %v493 = vadd.f32 %v485, %v176
  %v494 = vadd.f32 %v486, %v177
  %v495 = vadd.f32 %v487, %v178
  %v496 = vadd.f32 %v488, %v179
  %v497 = vxor.u32 %v489, 2147483648
  %v498 = vxor.u32 %v490, 2147483648
  %v499 = vxor.u32 %v491, 2147483648
  %v500 = vxor.u32 %v492, 2147483648
  %v501 = vmul.f32 %v497, 1.442695
  %v502 = vpow.pop %v501
  %v503 = vmul.f32 %v498, 1.442695
  %v504 = vpow.pop %v503
  %v505 = vmul.f32 %v499, 1.442695
  %v506 = vpow.pop %v505
  %v507 = vmul.f32 %v500, 1.442695
  %v508 = vpow.pop %v507
  %v509 = vadd.f32 %v502, 1.0
  %v510 = vadd.f32 %v504, 1.0
  %v511 = vadd.f32 %v506, 1.0
  %v512 = vadd.f32 %v508, 1.0
  %v513 = vrcp.pop %v509
  %v514 = vmul.f32 1.0, %v513
  %v515 = vrcp.pop %v510
  %v516 = vmul.f32 1.0, %v515
  %v517 = vrcp.pop %v511
  %v518 = vmul.f32 1.0, %v517
  %v519 = vrcp.pop %v512
  %v520 = vmul.f32 1.0, %v519
  %v521 = vxor.u32 %v493, 2147483648
  %v522 = vxor.u32 %v494, 2147483648
  %v523 = vxor.u32 %v495, 2147483648
  %v524 = vxor.u32 %v496, 2147483648
  %v525 = vmul.f32 %v521, 1.442695
  %v526 = vpow.pop %v525
  %v527 = vmul.f32 %v522, 1.442695
  %v528 = vpow.pop %v527
  %v529 = vmul.f32 %v523, 1.442695
  %v530 = vpow.pop %v529
  %v531 = vmul.f32 %v524, 1.442695
  %v532 = vpow.pop %v531
  %v533 = vadd.f32 %v526, 1.0
  %v534 = vadd.f32 %v528, 1.0
  %v535 = vadd.f32 %v530, 1.0
  %v536 = vadd.f32 %v532, 1.0
  %v537 = vrcp.pop %v533
  %v538 = vmul.f32 1.0, %v537
  %v539 = vrcp.pop %v534
  %v540 = vmul.f32 1.0, %v539
  %v541 = vrcp.pop %v535
  %v542 = vmul.f32 1.0, %v541
  %v543 = vrcp.pop %v536
  %v544 = vmul.f32 1.0, %v543
  %v545 = vmul.f32 %v538, %v144
  %v546 = vmul.f32 %v540, %v145
  %v547 = vmul.f32 %v542, %v146
  %v548 = vmul.f32 %v544, %v147
  %v550 = vsel %vm184, %v168, 0
  %v553 = vsel %vm184, %v169, 0
  %v556 = vsel %vm184, %v170, 0
  %v559 = vsel %vm184, %v171, 0
  %561 = vmatprep.subr.mxu0 0.0
  %562 = vmatpush1.msra.mxu0 0.0
  %563 = vmatprep.subr.mxu0 0.0
  %564 = vmatpush1.msra.mxu0 0.0
  %565 = vmatprep.subr.mxu0 0.0
  %566 = vmatpush1.msra.mxu0 0.0
  %567 = vmatprep.subr.mxu0 0.0
  %568 = vmatpush1.msra.mxu0 0.0
  %569 = vmatprep.subr.mxu0 0.0
  %570 = vmatpush1.msra.mxu0 0.0
  %571 = vmatprep.subr.mxu0 0.0
  %572 = vmatpush1.msra.mxu0 0.0
  %573 = vmatprep.subr.mxu0 0.0
  %574 = vmatpush1.msra.mxu0 0.0
  %575 = vmatprep.subr.mxu0 0.0
  %576 = vmatpush1.msra.mxu0 0.0
  %577 = vmatprep.subr.mxu0 0.0
  %578 = vmatpush1.msra.mxu0 0.0
  %579 = vmatprep.subr.mxu0 0.0
  %580 = vmatpush1.msra.mxu0 0.0
  %581 = vmatprep.subr.mxu0 0.0
  %582 = vmatpush1.msra.mxu0 0.0
  %583 = vmatprep.subr.mxu0 0.0
  %584 = vmatpush1.msra.mxu0 0.0
  %585 = vmatprep.subr.mxu0 0.0
  %586 = vmatpush1.msra.mxu0 %v548
  %587 = vmatprep.subr.mxu0 0.0
  %588 = vmatpush1.msra.mxu0 %v547
  %589 = vmatprep.subr.mxu0 0.0
  %590 = vmatpush1.msra.mxu0 %v546
  %591 = vmatprep.subr.mxu0 0.0
  %592 = vmatpush1.msra.mxu0 %v545
  %593 = vmatprep.subr.mxu0 0.0
  %594 = vmatpush2.msra.mxu0 0.0
  %595 = vmatprep.subr.mxu0 0.0
  %596 = vmatpush2.msra.mxu0 0.0
  %597 = vmatprep.subr.mxu0 0.0
  %598 = vmatpush2.msra.mxu0 0.0
  %599 = vmatprep.subr.mxu0 0.0
  %600 = vmatpush2.msra.mxu0 0.0
  %601 = vmatprep.subr.mxu0 0.0
  %602 = vmatpush2.msra.mxu0 0.0
  %603 = vmatprep.subr.mxu0 0.0
  %604 = vmatpush2.msra.mxu0 0.0
  %605 = vmatprep.subr.mxu0 0.0
  %606 = vmatpush2.msra.mxu0 0.0
  %607 = vmatprep.subr.mxu0 0.0
  %608 = vmatpush2.msra.mxu0 0.0
  %609 = vmatprep.subr.mxu0 0.0
  %610 = vmatpush2.msra.mxu0 0.0
  %611 = vmatprep.subr.mxu0 0.0
  %612 = vmatpush2.msra.mxu0 0.0
  %613 = vmatprep.subr.mxu0 0.0
  %614 = vmatpush2.msra.mxu0 0.0
  %615 = vmatprep.subr.mxu0 0.0
  %616 = vmatpush2.msra.mxu0 0.0
  %617 = vmatprep.subr.mxu0 0.0
  %618 = vmatpush2.msra.mxu0 0.0
  %619 = vmatprep.subr.mxu0 0.0
  %620 = vmatpush2.msra.mxu0 0.0
  %621 = vmatprep.subr.mxu0 0.0
  %622 = vmatpush2.msra.mxu0 0.0
  %623 = vmatprep.subr.mxu0 0.0
  %624 = vmatpush2.msra.mxu0 0.0
  %625 = vmatprep.mubr.f32.mxu0 0.0
  %626 = vmatmul.mubr.f32.gmra.mxu0 %v550
  %v627 = vpop.f32.mrf.mxu0
  %v628 = vadd.f32 0.0, %v627
  %v629 = vpop.f32.mrf.mxu0
  %630 = vmatprep.mubr.f32.mxu0 0.0
  %631 = vmatmul.mubr.f32.gmra.mxu0 %v553
  %v632 = vpop.f32.mrf.mxu0
  %v633 = vadd.f32 0.0, %v632
  %v634 = vpop.f32.mrf.mxu0
  %635 = vmatprep.mubr.f32.mxu0 0.0
  %636 = vmatmul.mubr.f32.gmra.mxu0 %v556
  %v637 = vpop.f32.mrf.mxu0
  %v638 = vadd.f32 0.0, %v637
  %v639 = vpop.f32.mrf.mxu0
  %640 = vmatprep.mubr.f32.mxu0 0.0
  %641 = vmatmul.mubr.f32.gmra.mxu0 %v559
  %v642 = vpop.f32.mrf.mxu0
  %v643 = vadd.f32 0.0, %v642
  %v644 = vpop.f32.mrf.mxu0
  %645 = vdwg.mxu0
  %v646 = vadd.f32 %v334, %v628
  %v647 = vadd.f32 %v339, %v633
  %v648 = vadd.f32 %v344, %v638
  %v649 = vadd.f32 %v349, %v643
  %v650 = vadd.f32 %v646, %v180
  %v651 = vadd.f32 %v647, %v181
  %v652 = vadd.f32 %v648, %v182
  %v653 = vadd.f32 %v649, %v183
  %v654 = vtanh.pop %v650
  %v655 = vtanh.pop %v651
  %v656 = vtanh.pop %v652
  %v657 = vtanh.pop %v653
  %v658 = vsub.f32 1.0, %v514
  %v659 = vsub.f32 1.0, %v516
  %v660 = vsub.f32 1.0, %v518
  %v661 = vsub.f32 1.0, %v520
  %v662 = vmul.f32 %v658, %v144
  %v663 = vmul.f32 %v659, %v145
  %v664 = vmul.f32 %v660, %v146
  %v665 = vmul.f32 %v661, %v147
  %v666 = vmul.f32 %v514, %v654
  %v667 = vmul.f32 %v516, %v655
  %v668 = vmul.f32 %v518, %v656
  %v669 = vmul.f32 %v520, %v657
  %v670 = vadd.f32 %v662, %v666
  %v671 = vadd.f32 %v663, %v667
  %v672 = vadd.f32 %v664, %v668
  %v673 = vadd.f32 %v665, %v669
  %vm674 = vcmask 130048
  %675 = vst.msk [vmem:[%s7] sm:$0xff] %vm674, %v670
  %676 = vst.msk [vmem:[%s7 + $0x8] sm:$0xff] %vm674, %v671
  %677 = vst.msk [vmem:[%s7 + $0x10] sm:$0xff] %vm674, %v672
  %678 = vst.msk [vmem:[%s7 + $0x18] sm:$0xff] %vm674, %v673
  // Predicated region
  $region30: #{mat_gru_cell.1} parent=0 // pred_check
    _
  $region31: #{mat_gru_cell.1} parent=0 // pred_check_branch
    %680 = sbr.rel (0) target = $region33
  $region32: #{mat_gru_cell.1} parent=0 // pred_region
    _
  $region33: #{mat_gru_cell.1} parent=0 // pred_fallthru
    _
  // Predicated region
  $region34: #{mat_gru_cell.1} parent=0 // pred_check
    _
  $region35: #{mat_gru_cell.1} parent=0 // pred_check_branch
    %682 = sbr.rel (0) target = $region37
  $region36: #{mat_gru_cell.1} parent=0 // pred_region
    _
  $region37: #{mat_gru_cell.1} parent=0 // pred_fallthru
    _

</llo_original>
